<compile_context>
chip_gen: v5e
topology: v5e:2x2
jax: 0.10.0
libtpu: 0.0.40
codegen_flags: <defaults>
</compile_context>

<pallas_src>
import functools

import jax
import jax.numpy as jnp
from jax.experimental import pallas as pl
from jax.experimental.pallas import tpu as pltpu

HIDDEN = 128   # hidden width of the MLP (matches nn.Linear(input_dim, 128))
LANE = 128     # TPU lane width -- pad input/output feature dims to a multiple of this


def _round_up(n, m):
    return (n + m - 1) // m * m


def _vpg_mlp_kernel(x_ref, w1_ref, b1_ref, w2_ref, b2_ref, w3_ref, b3_ref, o_ref):
    """Fused forward: relu(x@W1+b1) -> relu(.@W2+b2) -> .@W3+b3 (lane-padded logits)."""
    x = x_ref[...]                                                         # (tb, in_pad) bf16
    h1 = jnp.dot(x, w1_ref[...], preferred_element_type=jnp.float32) + b1_ref[...]
    h1 = jnp.maximum(h1, 0.0).astype(jnp.bfloat16)                         # (tb, 128)
    h2 = jnp.dot(h1, w2_ref[...], preferred_element_type=jnp.float32) + b2_ref[...]
    h2 = jnp.maximum(h2, 0.0).astype(jnp.bfloat16)                         # (tb, 128)
    logits = jnp.dot(h2, w3_ref[...], preferred_element_type=jnp.float32) + b3_ref[...]
    o_ref[...] = logits.astype(o_ref.dtype)                                # (tb, act_pad)


def prepare_params(params):
    """One-time layout plumbing (do NOT call per forward step).

    Torch layout W (out, in), b (out,)  ->  kernel layout:
      W^T (in_pad, 128) / (128, 128) / (128, act_pad), zero-padded, bf16;
      biases (1, out_pad) f32.
    Zero padding is mathematically an identity for the real rows/columns.
    """
    input_dim = params["w1"].shape[1]
    n_actions = params["w3"].shape[0]
    in_pad = max(_round_up(input_dim, LANE), LANE)
    act_pad = max(_round_up(n_actions, LANE), LANE)

    w1t = jnp.pad(params["w1"].T.astype(jnp.float32),
                  ((0, in_pad - input_dim), (0, 0))).astype(jnp.bfloat16)      # (in_pad, 128)
    w2t = params["w2"].T.astype(jnp.bfloat16)                                  # (128, 128)
    w3t = jnp.pad(params["w3"].T.astype(jnp.float32),
                  ((0, 0), (0, act_pad - n_actions))).astype(jnp.bfloat16)     # (128, act_pad)
    b1 = params["b1"].astype(jnp.float32).reshape(1, HIDDEN)
    b2 = params["b2"].astype(jnp.float32).reshape(1, HIDDEN)
    b3 = jnp.pad(params["b3"].astype(jnp.float32),
                 (0, act_pad - n_actions)).reshape(1, act_pad)
    return {"w1t": w1t, "b1": b1, "w2t": w2t, "b2": b2, "w3t": w3t, "b3": b3}


@functools.partial(jax.jit, static_argnames=("n_actions", "block_b"))
def vpg_policy_forward(x, prep, n_actions, block_b=512):
    """x: (B, input_dim) float32.  prep: output of prepare_params().
    Returns (B, n_actions) f32 logits."""
    B, input_dim = x.shape
    in_pad = prep["w1t"].shape[0]
    act_pad = prep["w3t"].shape[1]

    # Effective batch tile: whole (sublane-rounded) batch for small B, else block_b
    # (multiple of 8 for f32 sublanes).  Large tiles amortize per-grid-step overhead;
    # for large batches there are >=2 steps, so the "parallel" axis can shard across
    # both TensorCores on v7x.
    tb = min(_round_up(block_b, 8), _round_up(B, 8))
    Bp = _round_up(B, tb)

    # Lane-pad the input to a 128 multiple and batch-pad to a tile multiple;
    # cast the MXU operand to bf16.  (No-op pads fold away under jit.)
    xp = jnp.pad(x, ((0, Bp - B), (0, in_pad - input_dim))).astype(jnp.bfloat16)

    grid = (Bp // tb,)

    flops_per_row = 2 * (in_pad * HIDDEN + HIDDEN * HIDDEN + HIDDEN * act_pad)
    cost = pl.CostEstimate(
        flops=Bp * flops_per_row,
        transcendentals=0,
        bytes_accessed=xp.size * 2 + Bp * act_pad * 4
        + (prep["w1t"].size + prep["w2t"].size + prep["w3t"].size) * 2,
    )

    out = pl.pallas_call(
        _vpg_mlp_kernel,
        out_shape=jax.ShapeDtypeStruct((Bp, act_pad), jnp.float32),
        grid_spec=pltpu.PrefetchScalarGridSpec(
            num_scalar_prefetch=0,
            grid=grid,
            in_specs=[
                pl.BlockSpec((tb, in_pad), lambda i: (i, 0)),      # x tile over batch (lane-dense)
                pl.BlockSpec((in_pad, HIDDEN), lambda i: (0, 0)),  # W1^T (resident across grid)
                pl.BlockSpec((1, HIDDEN), lambda i: (0, 0)),       # b1
                pl.BlockSpec((HIDDEN, HIDDEN), lambda i: (0, 0)),  # W2^T
                pl.BlockSpec((1, HIDDEN), lambda i: (0, 0)),       # b2
                pl.BlockSpec((HIDDEN, act_pad), lambda i: (0, 0)), # W3^T (lane-padded out cols)
                pl.BlockSpec((1, act_pad), lambda i: (0, 0)),      # b3
            ],
            out_specs=pl.BlockSpec((tb, act_pad), lambda i: (i, 0)),  # lane-dense stores
        ),
        compiler_params=pltpu.CompilerParams(
            dimension_semantics=("parallel",),
        ),
        cost_estimate=cost,
    )(xp, prep["w1t"], prep["b1"], prep["w2t"], prep["b2"], prep["w3t"], prep["b3"])

    # Drop batch padding and zero-padded logit columns (padded columns are exactly 0,
    # so they MUST be sliced off before softmax/sampling).
    return out[:B, :n_actions]


def init_params(key, input_dim, n_actions):
    """Deterministic init mirroring nn.Linear shapes: W (out,in), b (out,)."""
    k1, k2, k3, k4, k5, k6 = jax.random.split(key, 6)

    def uniform(k, shape, fan_in):
        bound = 1.0 / jnp.sqrt(fan_in)
        return jax.random.uniform(k, shape, jnp.float32, -bound, bound)

    return {
        "w1": uniform(k1, (HIDDEN, input_dim), input_dim),
        "b1": uniform(k2, (HIDDEN,), input_dim),
        "w2": uniform(k3, (HIDDEN, HIDDEN), HIDDEN),
        "b2": uniform(k4, (HIDDEN,), HIDDEN),
        "w3": uniform(k5, (n_actions, HIDDEN), HIDDEN),
        "b3": uniform(k6, (n_actions,), HIDDEN),
    }


def _reference_forward_f32(x, params):
    """Pure f32 reference (matches the PyTorch module semantics)."""
    h1 = jnp.maximum(x @ params["w1"].T + params["b1"], 0.0)
    h2 = jnp.maximum(h1 @ params["w2"].T + params["b2"], 0.0)
    return h2 @ params["w3"].T + params["b3"]


def _reference_forward_matched(x, prep, n_actions):
    """Reference using the same bf16-operand / f32-accumulate strategy as the kernel."""
    input_dim = x.shape[1]
    in_pad = prep["w1t"].shape[0]
    xp = jnp.pad(x, ((0, 0), (0, in_pad - input_dim))).astype(jnp.bfloat16)
    h1 = jnp.maximum(
        jnp.dot(xp, prep["w1t"], preferred_element_type=jnp.float32) + prep["b1"], 0.0
    ).astype(jnp.bfloat16)
    h2 = jnp.maximum(
        jnp.dot(h1, prep["w2t"], preferred_element_type=jnp.float32) + prep["b2"], 0.0
    ).astype(jnp.bfloat16)
    logits = jnp.dot(h2, prep["w3t"], preferred_element_type=jnp.float32) + prep["b3"]
    return logits[:, :n_actions]


if __name__ == "__main__":
    key = jax.random.PRNGKey(0)
    k_x, k_p = jax.random.split(key)

    batch, input_dim, n_actions = 8, 4, 2   # CartPole-like observation/action sizes
    x = jax.random.normal(k_x, (batch, input_dim), jnp.float32)
    params = init_params(k_p, input_dim, n_actions)

    prep = prepare_params(params)           # one-time layout prep (transpose/pad/cast)

    logits = vpg_policy_forward(x, prep, n_actions)
    logits = jax.block_until_ready(logits)

    assert logits.shape == (batch, n_actions)

    # Tight check against a reference using the identical bf16/f32 numeric strategy.
    ref_matched = _reference_forward_matched(x, prep, n_actions)
    assert jnp.allclose(logits, ref_matched, atol=1e-3, rtol=1e-3), "mismatch vs matched reference"

    # Looser semantic check against the pure-f32 PyTorch-equivalent forward.
    ref_f32 = _reference_forward_f32(x, params)
    assert jnp.allclose(logits, ref_f32, atol=5e-2, rtol=5e-2), "mismatch vs f32 reference"

    print("KERNEL_OK")
</pallas_src>

<mosaic_0001>
module attributes {stable_mosaic.version = 11 : i64} {
  func.func @_vpg_mlp_kernel(%arg0: i32, %arg1: memref<8x128xbf16, #tpu.memory_space<vmem>>, %arg2: memref<128x128xbf16, #tpu.memory_space<vmem>>, %arg3: memref<1x128xf32, #tpu.memory_space<vmem>>, %arg4: memref<128x128xbf16, #tpu.memory_space<vmem>>, %arg5: memref<1x128xf32, #tpu.memory_space<vmem>>, %arg6: memref<128x128xbf16, #tpu.memory_space<vmem>>, %arg7: memref<1x128xf32, #tpu.memory_space<vmem>>, %arg8: memref<8x128xf32, #tpu.memory_space<vmem>>) attributes {dimension_semantics = [#tpu.dimension_semantics<parallel>], iteration_bounds = array<i64: 1>, scalar_prefetch = 0 : i64, scratch_operands = 0 : i64, tpu.core_type = #tpu.core_type<tc>, window_params = [{transform_indices = @transform_0, window_bounds = array<i64: 8, 128>}, {pipeline_mode = #tpu.pipeline_mode<synchronous>, transform_indices = @transform_1, window_bounds = array<i64: 128, 128>}, {pipeline_mode = #tpu.pipeline_mode<synchronous>, transform_indices = @transform_2, window_bounds = array<i64: 1, 128>}, {pipeline_mode = #tpu.pipeline_mode<synchronous>, transform_indices = @transform_3, window_bounds = array<i64: 128, 128>}, {pipeline_mode = #tpu.pipeline_mode<synchronous>, transform_indices = @transform_4, window_bounds = array<i64: 1, 128>}, {pipeline_mode = #tpu.pipeline_mode<synchronous>, transform_indices = @transform_5, window_bounds = array<i64: 128, 128>}, {pipeline_mode = #tpu.pipeline_mode<synchronous>, transform_indices = @transform_6, window_bounds = array<i64: 1, 128>}, {transform_indices = @transform_7, window_bounds = array<i64: 8, 128>}]} {
    %c0 = arith.constant 0 : index
    %c0_0 = arith.constant 0 : index
    %0 = vector.load %arg1[%c0, %c0_0] : memref<8x128xbf16, #tpu.memory_space<vmem>>, vector<8x128xbf16>
    %c0_1 = arith.constant 0 : index
    %c0_2 = arith.constant 0 : index
    %1 = vector.load %arg2[%c0_1, %c0_2] : memref<128x128xbf16, #tpu.memory_space<vmem>>, vector<128x128xbf16>
    %cst = arith.constant dense<0.000000e+00> : vector<8x128xf32>
    %2 = tpu.matmul %0, %1, %cst {dimension_numbers = #tpu.dot_dimension_numbers<[1], [0], [0], [1], [0, 0, 1, 1], [], []>} : vector<8x128xbf16>, vector<128x128xbf16>, vector<8x128xf32> -> vector<8x128xf32>
    %c0_3 = arith.constant 0 : index
    %c0_4 = arith.constant 0 : index
    %3 = vector.load %arg3[%c0_3, %c0_4] : memref<1x128xf32, #tpu.memory_space<vmem>>, vector<1x128xf32>
    %4 = vector.broadcast %3 : vector<1x128xf32> to vector<8x128xf32>
    %5 = arith.addf %2, %4 : vector<8x128xf32>
    %cst_5 = arith.constant 0.000000e+00 : f32
    %6 = vector.broadcast %cst_5 : f32 to vector<8x128xf32>
    %7 = arith.maximumf %5, %6 : vector<8x128xf32>
    %8 = arith.truncf %7 : vector<8x128xf32> to vector<8x128xbf16>
    %c0_6 = arith.constant 0 : index
    %c0_7 = arith.constant 0 : index
    %9 = vector.load %arg4[%c0_6, %c0_7] : memref<128x128xbf16, #tpu.memory_space<vmem>>, vector<128x128xbf16>
    %cst_8 = arith.constant dense<0.000000e+00> : vector<8x128xf32>
    %10 = tpu.matmul %8, %9, %cst_8 {dimension_numbers = #tpu.dot_dimension_numbers<[1], [0], [0], [1], [0, 0, 1, 1], [], []>} : vector<8x128xbf16>, vector<128x128xbf16>, vector<8x128xf32> -> vector<8x128xf32>
    %c0_9 = arith.constant 0 : index
    %c0_10 = arith.constant 0 : index
    %11 = vector.load %arg5[%c0_9, %c0_10] : memref<1x128xf32, #tpu.memory_space<vmem>>, vector<1x128xf32>
    %12 = vector.broadcast %11 : vector<1x128xf32> to vector<8x128xf32>
    %13 = arith.addf %10, %12 : vector<8x128xf32>
    %cst_11 = arith.constant 0.000000e+00 : f32
    %14 = vector.broadcast %cst_11 : f32 to vector<8x128xf32>
    %15 = arith.maximumf %13, %14 : vector<8x128xf32>
    %16 = arith.truncf %15 : vector<8x128xf32> to vector<8x128xbf16>
    %c0_12 = arith.constant 0 : index
    %c0_13 = arith.constant 0 : index
    %17 = vector.load %arg6[%c0_12, %c0_13] : memref<128x128xbf16, #tpu.memory_space<vmem>>, vector<128x128xbf16>
    %cst_14 = arith.constant dense<0.000000e+00> : vector<8x128xf32>
    %18 = tpu.matmul %16, %17, %cst_14 {dimension_numbers = #tpu.dot_dimension_numbers<[1], [0], [0], [1], [0, 0, 1, 1], [], []>} : vector<8x128xbf16>, vector<128x128xbf16>, vector<8x128xf32> -> vector<8x128xf32>
    %c0_15 = arith.constant 0 : index
    %c0_16 = arith.constant 0 : index
    %19 = vector.load %arg7[%c0_15, %c0_16] : memref<1x128xf32, #tpu.memory_space<vmem>>, vector<1x128xf32>
    %20 = vector.broadcast %19 : vector<1x128xf32> to vector<8x128xf32>
    %21 = arith.addf %18, %20 : vector<8x128xf32>
    %c0_17 = arith.constant 0 : index
    %c0_18 = arith.constant 0 : index
    %22 = vector.load %arg8[%c0_17, %c0_18] : memref<8x128xf32, #tpu.memory_space<vmem>>, vector<8x128xf32>
    tpu.vector_store %arg8[%c0_17, %c0_18], %21 {strides = array<i32>} : memref<8x128xf32, #tpu.memory_space<vmem>>, vector<8x128xf32>,
    return
  }
  func.func @transform_0(%arg0: i32) -> (i32, i32) {
    %c0_i32 = arith.constant 0 : i32
    %c0_i32_0 = arith.constant 0 : i32
    return %arg0, %c0_i32 : i32, i32
  }
  func.func @transform_1(%arg0: i32) -> (i32, i32) {
    %c0_i32 = arith.constant 0 : i32
    %c0_i32_0 = arith.constant 0 : i32
    %c0_i32_1 = arith.constant 0 : i32
    return %c0_i32, %c0_i32_0 : i32, i32
  }
  func.func @transform_2(%arg0: i32) -> (i32, i32) {
    %c0_i32 = arith.constant 0 : i32
    %c0_i32_0 = arith.constant 0 : i32
    %c0_i32_1 = arith.constant 0 : i32
    return %c0_i32, %c0_i32_0 : i32, i32
  }
  func.func @transform_3(%arg0: i32) -> (i32, i32) {
    %c0_i32 = arith.constant 0 : i32
    %c0_i32_0 = arith.constant 0 : i32
    %c0_i32_1 = arith.constant 0 : i32
    return %c0_i32, %c0_i32_0 : i32, i32
  }
  func.func @transform_4(%arg0: i32) -> (i32, i32) {
    %c0_i32 = arith.constant 0 : i32
    %c0_i32_0 = arith.constant 0 : i32
    %c0_i32_1 = arith.constant 0 : i32
    return %c0_i32, %c0_i32_0 : i32, i32
  }
  func.func @transform_5(%arg0: i32) -> (i32, i32) {
    %c0_i32 = arith.constant 0 : i32
    %c0_i32_0 = arith.constant 0 : i32
    %c0_i32_1 = arith.constant 0 : i32
    return %c0_i32, %c0_i32_0 : i32, i32
  }
  func.func @transform_6(%arg0: i32) -> (i32, i32) {
    %c0_i32 = arith.constant 0 : i32
    %c0_i32_0 = arith.constant 0 : i32
    %c0_i32_1 = arith.constant 0 : i32
    return %c0_i32, %c0_i32_0 : i32, i32
  }
  func.func @transform_7(%arg0: i32) -> (i32, i32) {
    %c0_i32 = arith.constant 0 : i32
    %c0_i32_0 = arith.constant 0 : i32
    return %arg0, %c0_i32 : i32, i32
  }
}

</mosaic_0001>

<llo_original>
// kernel: vpg_policy_forward.1
$region0: #{vpg_policy_forward.1}
  #allocation0 [shape = 'u32[]', space=smem, size = 0x4, offset = 0x4, fixed_abs, tag = 'smem constant byte address 0x4 - core index']
  #allocation1 [shape = 'u32[72,128]{1,0:T(1,128)}', space=vmem, size = 0x9000, scoped, tag = 'internal scratch']
  %s0 = inlined_call_operand.vmem [shape: bf16[8,128], index: 0, kind: input, shape index: {}]
  %s1 = inlined_call_operand.hbm [shape: bf16[128,128], index: 1, kind: input, shape index: {}]
  %s2 = inlined_call_operand.vmem [shape: f32[1,128], index: 2, kind: input, shape index: {}]
  %s3 = inlined_call_operand.hbm [shape: bf16[128,128], index: 3, kind: input, shape index: {}]
  %s4 = inlined_call_operand.vmem [shape: f32[1,128], index: 4, kind: input, shape index: {}]
  %s5 = inlined_call_operand.hbm [shape: bf16[128,128], index: 5, kind: input, shape index: {}]
  %s6 = inlined_call_operand.vmem [shape: f32[1,128], index: 6, kind: input, shape index: {}]
  %s7 = inlined_call_operand.vmem [shape: f32[8,128], index: 7, kind: output, shape index: {}]
  %s8 = sld [smem:[#allocation0]]
  $region50: #{vpg_policy_forward.1} parent=0
    _
  %s10 = ssub.s32 1, %s8
  %s11 = scalar_select 0, %s10, %s8
  $region1: #{vpg_policy_forward.1} parent=0
    #allocation2 [shape = 'u8[32768]{0}', space=vmem, size = 0x8000, scoped, tag = 'input window, operand 1, single buffered']
    #allocation3 [shape = 's32[1]{0}', space=sflag, size = 0x4, scoped, tag = 'scoped memory for vpg_policy_forward.1']
    #allocation4 [shape = 'u8[32768]{0}', space=vmem, size = 0x8000, scoped, tag = 'input window, operand 3, single buffered']
    #allocation5 [shape = 's32[1]{0}', space=sflag, size = 0x4, scoped, tag = 'scoped memory for vpg_policy_forward.1']
    #allocation6 [shape = 'u8[32768]{0}', space=vmem, size = 0x8000, scoped, tag = 'input window, operand 5, single buffered']
    %12 = vsyncpa [#allocation3], 0
    %13 = vsyncpa [#allocation5], 0
    // Predicated region
    $region2: #{vpg_policy_forward.1} parent=1 // pred_check
      _
    $region3: #{vpg_policy_forward.1} parent=1 // pred_check_branch
      %15 = sbr.rel (0) target = $region5
    $region4: #{vpg_policy_forward.1} parent=1 // pred_region
      _
    $region5: #{vpg_policy_forward.1} parent=1 // pred_fallthru
      _
    // Predicated region
    $region6: #{vpg_policy_forward.1} parent=1 // pred_check
      _
    $region7: #{vpg_policy_forward.1} parent=1 // pred_check_branch
      %17 = sbr.rel (0) target = $region9
    $region8: #{vpg_policy_forward.1} parent=1 // pred_region
      %19 = vsyncadd [#allocation3], 0
      %s20 = sshll.u32 %s1, 4
      %s21 = int_to_ptr.hbm [resolvable:$true] %s20
      %s22 = sshll.u32 [#allocation2], 4
      %s23 = int_to_ptr.vmem [resolvable:$true] %s22
      %28 = dma.hbm_to_vmem [thread:$0]  %s21, 1024, %s23, [#allocation3], 64, 64, 4
    $region9: #{vpg_policy_forward.1} parent=1 // pred_fallthru
      _
    // Predicated region
    $region10: #{vpg_policy_forward.1} parent=1 // pred_check
      _
    $region11: #{vpg_policy_forward.1} parent=1 // pred_check_branch
      %30 = sbr.rel (0) target = $region13
    $region12: #{vpg_policy_forward.1} parent=1 // pred_region
      _
    $region13: #{vpg_policy_forward.1} parent=1 // pred_fallthru
      _
    // Predicated region
    $region14: #{vpg_policy_forward.1} parent=1 // pred_check
      _
    $region15: #{vpg_policy_forward.1} parent=1 // pred_check_branch
      %32 = sbr.rel (0) target = $region17
    $region16: #{vpg_policy_forward.1} parent=1 // pred_region
      %34 = vsyncadd [#allocation5], 0
      %s35 = sshll.u32 %s3, 4
      %s36 = int_to_ptr.hbm [resolvable:$true] %s35
      %s37 = sshll.u32 [#allocation4], 4
      %s38 = int_to_ptr.vmem [resolvable:$true] %s37
      %43 = dma.hbm_to_vmem [thread:$0]  %s36, 1024, %s38, [#allocation5], 64, 64, 4
    $region17: #{vpg_policy_forward.1} parent=1 // pred_fallthru
      _
    // Predicated region
    $region18: #{vpg_policy_forward.1} parent=1 // pred_check
      _
    $region19: #{vpg_policy_forward.1} parent=1 // pred_check_branch
      %45 = sbr.rel (0) target = $region21
    $region20: #{vpg_policy_forward.1} parent=1 // pred_region
      _
    $region21: #{vpg_policy_forward.1} parent=1 // pred_fallthru
      _
    // Predicated region
    $region22: #{vpg_policy_forward.1} parent=1 // pred_check
      _
    $region23: #{vpg_policy_forward.1} parent=1 // pred_check_branch
      %47 = sbr.rel (0) target = $region25
    $region24: #{vpg_policy_forward.1} parent=1 // pred_region
      %49 = vsyncadd [#allocation5], 0
      %s50 = sshll.u32 %s5, 4
      %s51 = int_to_ptr.hbm [resolvable:$true] %s50
      %s52 = sshll.u32 [#allocation6], 4
      %s53 = int_to_ptr.vmem [resolvable:$true] %s52
      %58 = dma.hbm_to_vmem [thread:$0]  %s51, 1024, %s53, [#allocation5], 64, 64, 4
    $region25: #{vpg_policy_forward.1} parent=1 // pred_fallthru
      _
    // Predicated region
    $region26: #{vpg_policy_forward.1} parent=1 // pred_check
      _
    $region27: #{vpg_policy_forward.1} parent=1 // pred_check_branch
      %60 = sbr.rel (0) target = $region29
    $region28: #{vpg_policy_forward.1} parent=1 // pred_region
      _
    $region29: #{vpg_policy_forward.1} parent=1 // pred_fallthru
      _
    // Predicated region
    $region30: #{vpg_policy_forward.1} parent=1 // pred_check
      _
    $region31: #{vpg_policy_forward.1} parent=1 // pred_check_branch
      %62 = sbr.rel (0) target = $region33
    $region32: #{vpg_policy_forward.1} parent=1 // pred_region
      %64 = dma.done [#allocation3], 1024
    $region33: #{vpg_policy_forward.1} parent=1 // pred_fallthru
      _
    // Predicated region
    $region34: #{vpg_policy_forward.1} parent=1 // pred_check
      _
    $region35: #{vpg_policy_forward.1} parent=1 // pred_check_branch
      %66 = sbr.rel (0) target = $region37
    $region36: #{vpg_policy_forward.1} parent=1 // pred_region
      %68 = dma.done [#allocation5], 1024
    $region37: #{vpg_policy_forward.1} parent=1 // pred_fallthru
      _
    // Predicated region
    $region38: #{vpg_policy_forward.1} parent=1 // pred_check
      _
    $region39: #{vpg_policy_forward.1} parent=1 // pred_check_branch
      %70 = sbr.rel (0) target = $region41
    $region40: #{vpg_policy_forward.1} parent=1 // pred_region
      %72 = dma.done [#allocation5], 1024
    $region41: #{vpg_policy_forward.1} parent=1 // pred_fallthru
      _
    %v73 = vld [vmem:[%s0] sm:$0xf]
    %v74 = vld [vmem:[#allocation2] sm:$0xf]
    %v75 = vld [vmem:[#allocation2 + $0x4] sm:$0xf]
    %v76 = vld [vmem:[#allocation2 + $0x8] sm:$0xf]
    %v77 = vld [vmem:[#allocation2 + $0xc] sm:$0xf]
    %v78 = vld [vmem:[#allocation2 + $0x10] sm:$0xf]
    %v79 = vld [vmem:[#allocation2 + $0x14] sm:$0xf]
    %v80 = vld [vmem:[#allocation2 + $0x18] sm:$0xf]
    %v81 = vld [vmem:[#allocation2 + $0x1c] sm:$0xf]
    %v82 = vld [vmem:[#allocation2 + $0x20] sm:$0xf]
    %v83 = vld [vmem:[#allocation2 + $0x24] sm:$0xf]
    %v84 = vld [vmem:[#allocation2 + $0x28] sm:$0xf]
    %v85 = vld [vmem:[#allocation2 + $0x2c] sm:$0xf]
    %v86 = vld [vmem:[#allocation2 + $0x30] sm:$0xf]
    %v87 = vld [vmem:[#allocation2 + $0x34] sm:$0xf]
    %v88 = vld [vmem:[#allocation2 + $0x38] sm:$0xf]
    %v89 = vld [vmem:[#allocation2 + $0x3c] sm:$0xf]
    %v90 = vld [vmem:[%s2] sm:$0x1]
    %v92 = vperm.slane %v90, 0
    %v110 = vunpack.c.l.b16 %v74
    %v111 = vunpack.c.l.b16 %v75
    %v112 = vunpack.c.l.b16 %v76
    %v113 = vunpack.c.l.b16 %v77
    %v114 = vunpack.c.l.b16 %v78
    %v115 = vunpack.c.l.b16 %v79
    %v116 = vunpack.c.l.b16 %v80
    %v117 = vunpack.c.l.b16 %v81
    %v118 = vunpack.c.l.b16 %v82
    %v119 = vunpack.c.l.b16 %v83
    %v120 = vunpack.c.l.b16 %v84
    %v121 = vunpack.c.l.b16 %v85
    %v122 = vunpack.c.l.b16 %v86
    %v123 = vunpack.c.l.b16 %v87
    %v124 = vunpack.c.l.b16 %v88
    %v125 = vunpack.c.l.b16 %v89
    %v126 = vpack.c.b16 %v111, %v110
    %v127 = vpack.c.b16 %v113, %v112
    %v128 = vpack.c.b16 %v115, %v114
    %v129 = vpack.c.b16 %v117, %v116
    %v130 = vpack.c.b16 %v119, %v118
    %v131 = vpack.c.b16 %v121, %v120
    %v132 = vpack.c.b16 %v123, %v122
    %v133 = vpack.c.b16 %v125, %v124
    %142 = vmatpush.bf16.msra.mxu0 %v133
    %143 = vmatpush.bf16.msra.mxu0 %v132
    %144 = vmatpush.bf16.msra.mxu0 %v131
    %145 = vmatpush.bf16.msra.mxu0 %v130
    %146 = vmatpush.bf16.msra.mxu0 %v129
    %147 = vmatpush.bf16.msra.mxu0 %v128
    %148 = vmatpush.bf16.msra.mxu0 %v127
    %149 = vmatpush.bf16.msra.mxu0 %v126
    %150 = vmatmul.bf16.gmra.mxu0 %v73
    %v151 = vpop.f32.mrf.mxu0
    %v152 = vadd.f32 %v92, %v151
    %v153 = vpop.f32.mrf.mxu0
    %154 = vdwg.mxu0
    %v155 = vmax.f32 %v152, 0.0
    %v156 = vpack.c.bf16 %v155, %v155
    %v157 = vld [vmem:[#allocation4] sm:$0xf]
    %v158 = vld [vmem:[#allocation4 + $0x4] sm:$0xf]
    %v159 = vld [vmem:[#allocation4 + $0x8] sm:$0xf]
    %v160 = vld [vmem:[#allocation4 + $0xc] sm:$0xf]
    %v161 = vld [vmem:[#allocation4 + $0x10] sm:$0xf]
    %v162 = vld [vmem:[#allocation4 + $0x14] sm:$0xf]
    %v163 = vld [vmem:[#allocation4 + $0x18] sm:$0xf]
    %v164 = vld [vmem:[#allocation4 + $0x1c] sm:$0xf]
    %v165 = vld [vmem:[#allocation4 + $0x20] sm:$0xf]
    %v166 = vld [vmem:[#allocation4 + $0x24] sm:$0xf]
    %v167 = vld [vmem:[#allocation4 + $0x28] sm:$0xf]
    %v168 = vld [vmem:[#allocation4 + $0x2c] sm:$0xf]
    %v169 = vld [vmem:[#allocation4 + $0x30] sm:$0xf]
    %v170 = vld [vmem:[#allocation4 + $0x34] sm:$0xf]
    %v171 = vld [vmem:[#allocation4 + $0x38] sm:$0xf]
    %v172 = vld [vmem:[#allocation4 + $0x3c] sm:$0xf]
    %v173 = vld [vmem:[%s4] sm:$0x1]
    %v175 = vperm.slane %v173, 0
    %v193 = vunpack.c.l.b16 %v157
    %v194 = vunpack.c.l.b16 %v158
    %v195 = vunpack.c.l.b16 %v159
    %v196 = vunpack.c.l.b16 %v160
    %v197 = vunpack.c.l.b16 %v161
    %v198 = vunpack.c.l.b16 %v162
    %v199 = vunpack.c.l.b16 %v163
    %v200 = vunpack.c.l.b16 %v164
    %v201 = vunpack.c.l.b16 %v165
    %v202 = vunpack.c.l.b16 %v166
    %v203 = vunpack.c.l.b16 %v167
    %v204 = vunpack.c.l.b16 %v168
    %v205 = vunpack.c.l.b16 %v169
    %v206 = vunpack.c.l.b16 %v170
    %v207 = vunpack.c.l.b16 %v171
    %v208 = vunpack.c.l.b16 %v172
    %v209 = vpack.c.b16 %v194, %v193
    %v210 = vpack.c.b16 %v196, %v195
    %v211 = vpack.c.b16 %v198, %v197
    %v212 = vpack.c.b16 %v200, %v199
    %v213 = vpack.c.b16 %v202, %v201
    %v214 = vpack.c.b16 %v204, %v203
    %v215 = vpack.c.b16 %v206, %v205
    %v216 = vpack.c.b16 %v208, %v207
    %225 = vmatpush.bf16.msra.mxu0 %v216
    %226 = vmatpush.bf16.msra.mxu0 %v215
    %227 = vmatpush.bf16.msra.mxu0 %v214
    %228 = vmatpush.bf16.msra.mxu0 %v213
    %229 = vmatpush.bf16.msra.mxu0 %v212
    %230 = vmatpush.bf16.msra.mxu0 %v211
    %231 = vmatpush.bf16.msra.mxu0 %v210
    %232 = vmatpush.bf16.msra.mxu0 %v209
    %233 = vmatmul.bf16.gmra.mxu0 %v156
    %v234 = vpop.f32.mrf.mxu0
    %v235 = vadd.f32 %v175, %v234
    %v236 = vpop.f32.mrf.mxu0
    %237 = vdwg.mxu0
    %v238 = vmax.f32 %v235, 0.0
    %v239 = vpack.c.bf16 %v238, %v238
    %v240 = vld [vmem:[#allocation6] sm:$0xf]
    %v241 = vld [vmem:[#allocation6 + $0x4] sm:$0xf]
    %v242 = vld [vmem:[#allocation6 + $0x8] sm:$0xf]
    %v243 = vld [vmem:[#allocation6 + $0xc] sm:$0xf]
    %v244 = vld [vmem:[#allocation6 + $0x10] sm:$0xf]
    %v245 = vld [vmem:[#allocation6 + $0x14] sm:$0xf]
    %v246 = vld [vmem:[#allocation6 + $0x18] sm:$0xf]
    %v247 = vld [vmem:[#allocation6 + $0x1c] sm:$0xf]
    %v248 = vld [vmem:[#allocation6 + $0x20] sm:$0xf]
    %v249 = vld [vmem:[#allocation6 + $0x24] sm:$0xf]
    %v250 = vld [vmem:[#allocation6 + $0x28] sm:$0xf]
    %v251 = vld [vmem:[#allocation6 + $0x2c] sm:$0xf]
    %v252 = vld [vmem:[#allocation6 + $0x30] sm:$0xf]
    %v253 = vld [vmem:[#allocation6 + $0x34] sm:$0xf]
    %v254 = vld [vmem:[#allocation6 + $0x38] sm:$0xf]
    %v255 = vld [vmem:[#allocation6 + $0x3c] sm:$0xf]
    %v256 = vld [vmem:[%s6] sm:$0x1]
    %v258 = vperm.slane %v256, 0
    %v276 = vunpack.c.l.b16 %v240
    %v277 = vunpack.c.l.b16 %v241
    %v278 = vunpack.c.l.b16 %v242
    %v279 = vunpack.c.l.b16 %v243
    %v280 = vunpack.c.l.b16 %v244
    %v281 = vunpack.c.l.b16 %v245
    %v282 = vunpack.c.l.b16 %v246
    %v283 = vunpack.c.l.b16 %v247
    %v284 = vunpack.c.l.b16 %v248
    %v285 = vunpack.c.l.b16 %v249
    %v286 = vunpack.c.l.b16 %v250
    %v287 = vunpack.c.l.b16 %v251
    %v288 = vunpack.c.l.b16 %v252
    %v289 = vunpack.c.l.b16 %v253
    %v290 = vunpack.c.l.b16 %v254
    %v291 = vunpack.c.l.b16 %v255
    %v292 = vpack.c.b16 %v277, %v276
    %v293 = vpack.c.b16 %v279, %v278
    %v294 = vpack.c.b16 %v281, %v280
    %v295 = vpack.c.b16 %v283, %v282
    %v296 = vpack.c.b16 %v285, %v284
    %v297 = vpack.c.b16 %v287, %v286
    %v298 = vpack.c.b16 %v289, %v288
    %v299 = vpack.c.b16 %v291, %v290
    %308 = vmatpush.bf16.msra.mxu0 %v299
    %309 = vmatpush.bf16.msra.mxu0 %v298
    %310 = vmatpush.bf16.msra.mxu0 %v297
    %311 = vmatpush.bf16.msra.mxu0 %v296
    %312 = vmatpush.bf16.msra.mxu0 %v295
    %313 = vmatpush.bf16.msra.mxu0 %v294
    %314 = vmatpush.bf16.msra.mxu0 %v293
    %315 = vmatpush.bf16.msra.mxu0 %v292
    %316 = vmatmul.bf16.gmra.mxu0 %v239
    %v317 = vpop.f32.mrf.mxu0
    %v318 = vadd.f32 %v258, %v317
    %v319 = vpop.f32.mrf.mxu0
    %320 = vdwg.mxu0
    %321 = vst [vmem:[%s7] sm:$0xff] %v318
    // Predicated region
    $region42: #{vpg_policy_forward.1} parent=1 // pred_check
      _
    $region43: #{vpg_policy_forward.1} parent=1 // pred_check_branch
      %323 = sbr.rel (0) target = $region45
    $region44: #{vpg_policy_forward.1} parent=1 // pred_region
      _
    $region45: #{vpg_policy_forward.1} parent=1 // pred_fallthru
      _
    // Predicated region
    $region46: #{vpg_policy_forward.1} parent=1 // pred_check
      _
    $region47: #{vpg_policy_forward.1} parent=1 // pred_check_branch
      %325 = sbr.rel (0) target = $region49
    $region48: #{vpg_policy_forward.1} parent=1 // pred_region
      _
    $region49: #{vpg_policy_forward.1} parent=1 // pred_fallthru
      _
    %326 = vsyncpa [#allocation3], 1
    %327 = vsyncpa [#allocation5], 1

</llo_original>
